<compile_context>
chip_gen: v5e
topology: v5e:2x2
jax: 0.10.0
libtpu: 0.0.40
codegen_flags: <defaults>
</compile_context>

<pallas_src>
import math

import jax
import jax.numpy as jnp
from jax import lax
from jax.experimental import pallas as pl
from jax.experimental.pallas import tpu as pltpu


def _make_kernel(*, tile_t, k, batch, block_kb, has_dense):
    """Build the kernel closure.

    batch    -- true (un-packed) batch rows produced by one batch block.
    block_kb -- packed rows (k * batch) streamed per feature tile.
    """

    def kernel(feat_ref, vlen_ref, denom_ref, *rest):
        if has_dense:
            w1_ref, b1_ref, w2_ref, b2_ref, out_ref, acc_ref = rest
        else:
            w2_ref, b2_ref, out_ref, acc_ref = rest

        t = pl.program_id(1)

        @pl.when(t == 0)
        def _():
            acc_ref[...] = jnp.zeros_like(acc_ref)

        # Validity mask built in-kernel from per-column valid lengths
        # (right padding): tile row r is packed time index t*tile_t + r.
        time_idx = lax.broadcasted_iota(jnp.int32, (tile_t, block_kb, 1), 0) + t * tile_t
        maskf = (time_idx < vlen_ref[...][None, :, :]).astype(jnp.float32)  # (tile_t, kb, 1)

        feats = feat_ref[...].astype(jnp.float32)                           # (tile_t, kb, C)
        # TODO(synk): for bf16 inputs verify (pl.lower_as_mlir) that the upcast +
        # multiply + reduce streams per-vreg; if a full f32 tile materializes,
        # accumulate in sub-chunks of the time axis.
        acc_ref[...] += jnp.sum(feats * maskf, axis=0)                      # (kb, C)

        @pl.when(t == pl.num_programs(1) - 1)
        def _():
            acc = acc_ref[...]
            if k > 1:
                # Fold the k time-interleaved groups back onto the true batch rows.
                pooled = acc[0:batch, :]
                for g in range(1, k):
                    pooled = pooled + acc[g * batch:(g + 1) * batch, :]
            else:
                pooled = acc
            # Fully padded rows divide by zero -> inf/nan, matching the PyTorch ref.
            pooled = pooled / denom_ref[...]

            if has_dense:
                h = jnp.dot(pooled.astype(w1_ref.dtype), w1_ref[...],
                            preferred_element_type=jnp.float32)
                h = jnp.tanh(h + b1_ref[...].astype(jnp.float32))
            else:
                h = pooled
            out = jnp.dot(h.astype(w2_ref.dtype), w2_ref[...],
                          preferred_element_type=jnp.float32)
            out_ref[...] = (out + b2_ref[...].astype(jnp.float32)).astype(out_ref.dtype)

    return kernel


def wav2vec2_bert_class_head(features, padding_mask, w1, b1, w2, b2,
                             *, tile_t=None, target_tile_bytes=None):
    """features: (T, B, C) time-major; padding_mask: (B, T) bool (True = padded) or None.
    w1: (C, inner) pre-transposed or None (inner_dim == 0 case); b1: (inner,) or None;
    w2: (inner_or_C, num_outs) pre-transposed; b2: (num_outs,).

    NOTE: assumes fairseq-style right padding (each padding_mask row is a run of
    False followed by a run of True), so the mask reduces to per-row lengths.
    # TODO(synk): arbitrary (non-suffix) padding masks are not supported here.
    """
    T, B, C = features.shape
    has_dense = w1 is not None
    num_outs = w2.shape[1]
    inner = w1.shape[1] if has_dense else 0
    itemsize = features.dtype.itemsize

    # ---- per-batch valid lengths replace the (T, B, 1) mask tensor -------------
    if padding_mask is None:
        lengths = jnp.full((B,), T, dtype=jnp.int32)
    else:
        lengths = jnp.sum(jnp.logical_not(padding_mask), axis=1).astype(jnp.int32)
    denom = lengths.astype(jnp.float32).reshape(B, 1)

    # ---- pack small batches to full sublanes: (T, B, C) -> (T//k, k*B, C) ------
    sub = max(8, 32 // itemsize)                 # 8 for f32, 16 for bf16, 32 for int8
    k = 1 if B % sub == 0 else sub // math.gcd(B, sub)
    if k > 1 and T % k != 0:
        features = jnp.pad(features, ((0, k - T % k), (0, 0), (0, 0)))
    kB = k * B
    if k > 1:
        features = features.reshape(features.shape[0] // k, kB, C)
    Tr = features.shape[0]

    # Packed column j = g*B + b is valid at packed step t' iff t'*k + g < lengths[b].
    g = jnp.arange(k, dtype=jnp.int32)
    vlen = jnp.maximum((lengths[None, :] - g[:, None] + (k - 1)) // k, 0)
    vlen = vlen.reshape(kB, 1).astype(jnp.int32)

    # ---- batch blocking (megacore) ----------------------------------------------
    if k == 1 and B % (2 * sub) == 0:
        block_kb = kB // 2      # two "parallel" batch blocks -> both TensorCores stream
    else:
        block_kb = kB           # TODO(synk): for tiny batches, split the time
                                # reduction across cores instead of idling TC1.
    b_out = B if k > 1 else block_kb

    # ---- time tile sized from *block* bytes; explicit per-generation VMEM budget --
    try:
        phys_vmem = int(pltpu.get_tpu_info().vmem_capacity_bytes)
    except Exception:
        phys_vmem = 64 << 20
    if target_tile_bytes is None:
        # v7x (64 MiB VMEM, ~3.2 TB/s HBM) wants *bigger* tiles than v6e/v5e.
        target_tile_bytes = (12 << 20) if phys_vmem <= (64 << 20) else (8 << 20)
    if tile_t is None:
        bytes_per_row = block_kb * C * itemsize
        tile_t = max(1, min(Tr, target_tile_bytes // max(bytes_per_row, 1)))
        if tile_t >= 8:
            tile_t = (tile_t // 8) * 8
    tile_t = int(tile_t)

    t_pad = pl.cdiv(Tr, tile_t) * tile_t
    if t_pad != Tr:                       # padded rows are masked out by vlen
        features = jnp.pad(features, ((0, t_pad - Tr), (0, 0), (0, 0)))

    grid = (kB // block_kb, t_pad // tile_t)

    # ---- explicit scoped-VMEM limit from the actual footprint -------------------
    feat_tile_bytes = tile_t * block_kb * C * itemsize
    weight_bytes = sum(int(a.size) * a.dtype.itemsize
                       for a in ((w1, b1, w2, b2) if has_dense else (w2, b2)))
    needed = (2 * feat_tile_bytes                        # double-buffered feature tiles
              + 2 * weight_bytes                         # residents (budget 2x, safe)
              + block_kb * C * 4                         # f32 accumulator scratch
              + feat_tile_bytes * max(1, 4 // itemsize)  # worst-case f32 upcast temp
              + (2 << 20))                               # headroom
    vmem_limit = int(min(max(needed, 32 << 20), int(phys_vmem * 0.9)))

    cost = pl.CostEstimate(
        flops=int(2 * features.size
                  + (2 * B * C * inner if has_dense else 0)
                  + 2 * B * (inner if has_dense else C) * num_outs),
        transcendentals=int(B * inner if has_dense else 0),
        bytes_accessed=int(features.size * itemsize + weight_bytes
                           + vlen.size * 4 + denom.size * 4
                           + B * num_outs * w2.dtype.itemsize),
    )

    kernel = _make_kernel(tile_t=tile_t, k=k, batch=B, block_kb=block_kb,
                          has_dense=has_dense)

    def build_specs(single_buffer_residents):
        def resident(shape, index_map):
            if single_buffer_residents:
                return pl.BlockSpec(shape, index_map, pipeline_mode=pl.Buffered(1))
            return pl.BlockSpec(shape, index_map)

        in_specs = [
            pl.BlockSpec((tile_t, block_kb, C), lambda b, t: (t, b, 0)),   # features (streamed)
            resident((block_kb, 1), lambda b, t: (b, 0)),                  # valid lengths (i32)
            resident((b_out, 1), lambda b, t: (b, 0)),                     # pooling denom (f32)
        ]
        if has_dense:
            in_specs += [resident((C, inner), lambda b, t: (0, 0)),        # w1
                         resident((1, inner), lambda b, t: (0, 0))]        # b1
        in_specs += [resident((w2.shape[0], num_outs), lambda b, t: (0, 0)),  # w2
                     resident((1, num_outs), lambda b, t: (0, 0))]            # b2
        return in_specs

    args = [features, vlen, denom]
    if has_dense:
        args += [w1, b1.reshape(1, -1)]
    args += [w2, b2.reshape(1, -1)]

    def run(single_buffer_residents):
        return pl.pallas_call(
            kernel,
            out_shape=jax.ShapeDtypeStruct((B, num_outs), w2.dtype),
            grid_spec=pltpu.PrefetchScalarGridSpec(
                num_scalar_prefetch=0,
                grid=grid,
                in_specs=build_specs(single_buffer_residents),
                out_specs=pl.BlockSpec((b_out, num_outs), lambda b, t: (b, 0)),
                scratch_shapes=[pltpu.VMEM((block_kb, C), jnp.float32)],   # masked-sum acc
            ),
            compiler_params=pltpu.CompilerParams(
                dimension_semantics=("parallel", "arbitrary"),
                vmem_limit_bytes=vmem_limit),
            cost_estimate=cost,
        )(*args)

    try:
        return run(True)
    except Exception:
        # Graceful fallback for JAX versions without BlockSpec pipeline_mode /
        # single-buffer support; residents then just use the default 2 buffers.
        return run(False)


# ------------------------------ pure-JAX reference -------------------------------
def _dot_hi(a, b):
    return jnp.dot(a, b, precision=lax.Precision.HIGHEST)


def _ref_pool(features, padding_mask):
    if padding_mask is None:
        return features.mean(0)
    m = (~padding_mask).T.astype(features.dtype)                            # (T, B)
    return (features / m.sum(0)[None, :, None] * m[:, :, None]).sum(0)


def _ref_forward(features, padding_mask, w1, b1, w2, b2):
    x = _ref_pool(features, padding_mask)
    if w1 is not None:
        x = jnp.tanh(_dot_hi(x, w1) + b1)
    return _dot_hi(x, w2) + b2


if __name__ == "__main__":
    # Small shapes consistent with the module's forward (T, B, C time-major).
    T, B = 8, 4
    input_dim, inner_dim, num_outs = 32, 32, 8

    key = jax.random.PRNGKey(0)
    k_feat, k_w1, k_b1, k_w2, k_b2 = jax.random.split(key, 5)

    features = jax.random.normal(k_feat, (T, B, input_dim), dtype=jnp.float32)

    # Per-batch variable valid lengths (right padding); True = padded position.
    lengths = jnp.array([8, 6, 5, 3], dtype=jnp.int32)                     # (B,)
    padding_mask = jnp.arange(T)[None, :] >= lengths[:, None]              # (B, T) bool

    # Deterministic synthetic Linear parameters (PyTorch-style uniform scale).
    s1 = 1.0 / float(input_dim) ** 0.5
    s2 = 1.0 / float(inner_dim) ** 0.5
    w1 = jax.random.uniform(k_w1, (input_dim, inner_dim), jnp.float32, -s1, s1)
    b1 = jax.random.uniform(k_b1, (inner_dim,), jnp.float32, -s1, s1)
    w2 = jax.random.uniform(k_w2, (inner_dim, num_outs), jnp.float32, -s2, s2)
    b2 = jax.random.uniform(k_b2, (num_outs,), jnp.float32, -s2, s2)

    # Tolerance leaves room for the MXU's default (bf16-pass) matmul precision.
    tol = dict(atol=2e-3, rtol=2e-3)

    out = jax.block_until_ready(
        wav2vec2_bert_class_head(features, padding_mask, w1, b1, w2, b2))
    assert out.shape == (B, num_outs)
    assert jnp.allclose(out, _ref_forward(features, padding_mask, w1, b1, w2, b2),
                        **tol), "mismatch vs reference (masked)"

    # padding_mask=None branch (plain mean over time); same shapes -> shared compile.
    out_nomask = jax.block_until_ready(
        wav2vec2_bert_class_head(features, None, w1, b1, w2, b2))
    assert jnp.allclose(out_nomask, _ref_forward(features, None, w1, b1, w2, b2),
                        **tol), "mismatch vs reference (no mask)"

    # inner_dim == 0 branch: no dense/activation, out_proj maps input_dim -> num_outs.
    w2_direct = jax.random.uniform(k_w2, (input_dim, num_outs), jnp.float32, -s2, s2)
    out_nodense = jax.block_until_ready(
        wav2vec2_bert_class_head(features, padding_mask, None, None, w2_direct, b2))
    assert jnp.allclose(out_nodense,
                        _ref_forward(features, padding_mask, None, None, w2_direct, b2),
                        **tol), "mismatch vs reference (inner_dim == 0)"

    print("KERNEL_OK")
</pallas_src>

<mosaic_0001>
module attributes {stable_mosaic.version = 11 : i64} {
  func.func @kernel(%arg0: i32, %arg1: i32, %arg2: memref<4x8x32xf32, #tpu.memory_space<vmem>>, %arg3: memref<8x1xi32, #tpu.memory_space<vmem>>, %arg4: memref<4x1xf32, #tpu.memory_space<vmem>>, %arg5: memref<32x32xf32, #tpu.memory_space<vmem>>, %arg6: memref<1x32xf32, #tpu.memory_space<vmem>>, %arg7: memref<32x8xf32, #tpu.memory_space<vmem>>, %arg8: memref<1x8xf32, #tpu.memory_space<vmem>>, %arg9: memref<4x8xf32, #tpu.memory_space<vmem>>, %arg10: memref<8x32xf32, #tpu.memory_space<vmem>>) attributes {dimension_semantics = [#tpu.dimension_semantics<parallel>, #tpu.dimension_semantics<arbitrary>], iteration_bounds = array<i64: 1, 1>, scalar_prefetch = 0 : i64, scratch_operands = 1 : i64, tpu.core_type = #tpu.core_type<tc>, window_params = [{transform_indices = @transform_0, window_bounds = array<i64: 4, 8, 32>}, {pipeline_mode = #tpu.pipeline_mode<synchronous>, transform_indices = @transform_1, window_bounds = array<i64: 8, 1>}, {pipeline_mode = #tpu.pipeline_mode<synchronous>, transform_indices = @transform_2, window_bounds = array<i64: 4, 1>}, {pipeline_mode = #tpu.pipeline_mode<synchronous>, transform_indices = @transform_3, window_bounds = array<i64: 32, 32>}, {pipeline_mode = #tpu.pipeline_mode<synchronous>, transform_indices = @transform_4, window_bounds = array<i64: 1, 32>}, {pipeline_mode = #tpu.pipeline_mode<synchronous>, transform_indices = @transform_5, window_bounds = array<i64: 32, 8>}, {pipeline_mode = #tpu.pipeline_mode<synchronous>, transform_indices = @transform_6, window_bounds = array<i64: 1, 8>}, {transform_indices = @transform_7, window_bounds = array<i64: 4, 8>}]} {
    %c0_i32 = arith.constant 0 : i32
    %0 = arith.cmpi eq, %arg1, %c0_i32 : i32
    %1 = arith.extui %0 : i1 to i32
    %c0_i32_0 = arith.constant 0 : i32
    %2 = arith.cmpi ne, %1, %c0_i32_0 : i32
    scf.if %2 {
      %cst_11 = arith.constant 0.000000e+00 : f32
      %23 = vector.broadcast %cst_11 : f32 to vector<8x32xf32>
      %c0_12 = arith.constant 0 : index
      %c0_13 = arith.constant 0 : index
      %24 = vector.load %arg10[%c0_12, %c0_13] : memref<8x32xf32, #tpu.memory_space<vmem>>, vector<8x32xf32>
      tpu.vector_store %arg10[%c0_12, %c0_13], %23 {strides = array<i32>} : memref<8x32xf32, #tpu.memory_space<vmem>>, vector<8x32xf32>,
    } else {
    }
    %3 = tpu.iota {dimensions = array<i32: 0>} : vector<4x8x1xi32>
    %c4_i32 = arith.constant 4 : i32
    %4 = arith.muli %arg1, %c4_i32 : i32
    %5 = vector.broadcast %4 : i32 to vector<4x8x1xi32>
    %6 = arith.addi %3, %5 : vector<4x8x1xi32>
    %c0 = arith.constant 0 : index
    %c0_1 = arith.constant 0 : index
    %7 = vector.load %arg3[%c0, %c0_1] : memref<8x1xi32, #tpu.memory_space<vmem>>, vector<8x1xi32>
    %8 = vector.shape_cast %7 : vector<8x1xi32> to vector<1x8x1xi32>
    %9 = vector.broadcast %8 : vector<1x8x1xi32> to vector<4x8x1xi32>
    %10 = arith.cmpi slt, %6, %9 : vector<4x8x1xi32>
    %11 = arith.extui %10 : vector<4x8x1xi1> to vector<4x8x1xi32>
    %12 = arith.sitofp %11 : vector<4x8x1xi32> to vector<4x8x1xf32>
    %c0_2 = arith.constant 0 : index
    %c0_3 = arith.constant 0 : index
    %c0_4 = arith.constant 0 : index
    %13 = vector.load %arg2[%c0_2, %c0_3, %c0_4] : memref<4x8x32xf32, #tpu.memory_space<vmem>>, vector<4x8x32xf32>
    %c0_5 = arith.constant 0 : index
    %c0_6 = arith.constant 0 : index
    %14 = vector.load %arg10[%c0_5, %c0_6] : memref<8x32xf32, #tpu.memory_space<vmem>>, vector<8x32xf32>
    %15 = vector.broadcast %12 : vector<4x8x1xf32> to vector<4x8x32xf32>
    %16 = arith.mulf %13, %15 : vector<4x8x32xf32>
    %cst = arith.constant dense<0.000000e+00> : vector<8x32xf32>
    %17 = vector.multi_reduction <add>, %16, %cst [0] : vector<4x8x32xf32> to vector<8x32xf32>
    %18 = arith.addf %14, %17 : vector<8x32xf32>
    %c0_7 = arith.constant 0 : index
    %c0_8 = arith.constant 0 : index
    %19 = vector.load %arg10[%c0_7, %c0_8] : memref<8x32xf32, #tpu.memory_space<vmem>>, vector<8x32xf32>
    tpu.vector_store %arg10[%c0_7, %c0_8], %18 {strides = array<i32>} : memref<8x32xf32, #tpu.memory_space<vmem>>, vector<8x32xf32>,
    %c0_i32_9 = arith.constant 0 : i32
    %20 = arith.cmpi eq, %arg1, %c0_i32_9 : i32
    %21 = arith.extui %20 : i1 to i32
    %c0_i32_10 = arith.constant 0 : i32
    %22 = arith.cmpi ne, %21, %c0_i32_10 : i32
    scf.if %22 {
      %c0_11 = arith.constant 0 : index
      %c0_12 = arith.constant 0 : index
      %23 = vector.load %arg10[%c0_11, %c0_12] : memref<8x32xf32, #tpu.memory_space<vmem>>, vector<8x32xf32>
      %24 = vector.extract_strided_slice %23 {offsets = [0, 0], sizes = [4, 32], strides = [1, 1]} : vector<8x32xf32> to vector<4x32xf32>
      %25 = vector.extract_strided_slice %23 {offsets = [4, 0], sizes = [4, 32], strides = [1, 1]} : vector<8x32xf32> to vector<4x32xf32>
      %26 = arith.addf %24, %25 : vector<4x32xf32>
      %c0_13 = arith.constant 0 : index
      %c0_14 = arith.constant 0 : index
      %27 = vector.load %arg4[%c0_13, %c0_14] : memref<4x1xf32, #tpu.memory_space<vmem>>, vector<4x1xf32>
      %28 = vector.broadcast %27 : vector<4x1xf32> to vector<4x32xf32>
      %29 = arith.divf %26, %28 : vector<4x32xf32>
      %c0_15 = arith.constant 0 : index
      %c0_16 = arith.constant 0 : index
      %30 = vector.load %arg5[%c0_15, %c0_16] : memref<32x32xf32, #tpu.memory_space<vmem>>, vector<32x32xf32>
      %cst_17 = arith.constant dense<0.000000e+00> : vector<4x32xf32>
      %31 = tpu.matmul %29, %30, %cst_17 {dimension_numbers = #tpu.dot_dimension_numbers<[1], [0], [0], [1], [0, 0, 1, 1], [], []>} : vector<4x32xf32>, vector<32x32xf32>, vector<4x32xf32> -> vector<4x32xf32>
      %c0_18 = arith.constant 0 : index
      %c0_19 = arith.constant 0 : index
      %32 = vector.load %arg6[%c0_18, %c0_19] : memref<1x32xf32, #tpu.memory_space<vmem>>, vector<1x32xf32>
      %33 = vector.broadcast %32 : vector<1x32xf32> to vector<4x32xf32>
      %34 = arith.addf %31, %33 : vector<4x32xf32>
      %35 = math.tanh %34 : vector<4x32xf32>
      %c0_20 = arith.constant 0 : index
      %c0_21 = arith.constant 0 : index
      %36 = vector.load %arg7[%c0_20, %c0_21] : memref<32x8xf32, #tpu.memory_space<vmem>>, vector<32x8xf32>
      %cst_22 = arith.constant dense<0.000000e+00> : vector<4x8xf32>
      %37 = tpu.matmul %35, %36, %cst_22 {dimension_numbers = #tpu.dot_dimension_numbers<[1], [0], [0], [1], [0, 0, 1, 1], [], []>} : vector<4x32xf32>, vector<32x8xf32>, vector<4x8xf32> -> vector<4x8xf32>
      %c0_23 = arith.constant 0 : index
      %c0_24 = arith.constant 0 : index
      %38 = vector.load %arg8[%c0_23, %c0_24] : memref<1x8xf32, #tpu.memory_space<vmem>>, vector<1x8xf32>
      %39 = vector.broadcast %38 : vector<1x8xf32> to vector<4x8xf32>
      %40 = arith.addf %37, %39 : vector<4x8xf32>
      %c0_25 = arith.constant 0 : index
      %c0_26 = arith.constant 0 : index
      %41 = vector.load %arg9[%c0_25, %c0_26] : memref<4x8xf32, #tpu.memory_space<vmem>>, vector<4x8xf32>
      tpu.vector_store %arg9[%c0_25, %c0_26], %40 {strides = array<i32>} : memref<4x8xf32, #tpu.memory_space<vmem>>, vector<4x8xf32>,
    } else {
    }
    return
  }
  func.func @transform_0(%arg0: i32, %arg1: i32) -> (i32, i32, i32) {
    %c0_i32 = arith.constant 0 : i32
    %c0_i32_0 = arith.constant 0 : i32
    return %arg1, %arg0, %c0_i32 : i32, i32, i32
  }
  func.func @transform_1(%arg0: i32, %arg1: i32) -> (i32, i32) {
    %c0_i32 = arith.constant 0 : i32
    %c0_i32_0 = arith.constant 0 : i32
    return %arg0, %c0_i32 : i32, i32
  }
  func.func @transform_2(%arg0: i32, %arg1: i32) -> (i32, i32) {
    %c0_i32 = arith.constant 0 : i32
    %c0_i32_0 = arith.constant 0 : i32
    return %arg0, %c0_i32 : i32, i32
  }
  func.func @transform_3(%arg0: i32, %arg1: i32) -> (i32, i32) {
    %c0_i32 = arith.constant 0 : i32
    %c0_i32_0 = arith.constant 0 : i32
    %c0_i32_1 = arith.constant 0 : i32
    return %c0_i32, %c0_i32_0 : i32, i32
  }
  func.func @transform_4(%arg0: i32, %arg1: i32) -> (i32, i32) {
    %c0_i32 = arith.constant 0 : i32
    %c0_i32_0 = arith.constant 0 : i32
    %c0_i32_1 = arith.constant 0 : i32
    return %c0_i32, %c0_i32_0 : i32, i32
  }
  func.func @transform_5(%arg0: i32, %arg1: i32) -> (i32, i32) {
    %c0_i32 = arith.constant 0 : i32
    %c0_i32_0 = arith.constant 0 : i32
    %c0_i32_1 = arith.constant 0 : i32
    return %c0_i32, %c0_i32_0 : i32, i32
  }
  func.func @transform_6(%arg0: i32, %arg1: i32) -> (i32, i32) {
    %c0_i32 = arith.constant 0 : i32
    %c0_i32_0 = arith.constant 0 : i32
    %c0_i32_1 = arith.constant 0 : i32
    return %c0_i32, %c0_i32_0 : i32, i32
  }
  func.func @transform_7(%arg0: i32, %arg1: i32) -> (i32, i32) {
    %c0_i32 = arith.constant 0 : i32
    %c0_i32_0 = arith.constant 0 : i32
    return %arg0, %c0_i32 : i32, i32
  }
}

module attributes {stable_mosaic.version = 11 : i64} {
  func.func @kernel(%arg0: i32, %arg1: i32, %arg2: memref<4x8x32xf32, #tpu.memory_space<vmem>>, %arg3: memref<8x1xi32, #tpu.memory_space<vmem>>, %arg4: memref<4x1xf32, #tpu.memory_space<vmem>>, %arg5: memref<32x32xf32, #tpu.memory_space<vmem>>, %arg6: memref<1x32xf32, #tpu.memory_space<vmem>>, %arg7: memref<32x8xf32, #tpu.memory_space<vmem>>, %arg8: memref<1x8xf32, #tpu.memory_space<vmem>>, %arg9: memref<4x8xf32, #tpu.memory_space<vmem>>, %arg10: memref<8x32xf32, #tpu.memory_space<vmem>>) attributes {dimension_semantics = [#tpu.dimension_semantics<parallel>, #tpu.dimension_semantics<arbitrary>], iteration_bounds = array<i64: 1, 1>, scalar_prefetch = 0 : i64, scratch_operands = 1 : i64, tpu.core_type = #tpu.core_type<tc>, window_params = [{transform_indices = @transform_0, window_bounds = array<i64: 4, 8, 32>}, {transform_indices = @transform_1, window_bounds = array<i64: 8, 1>}, {transform_indices = @transform_2, window_bounds = array<i64: 4, 1>}, {pipeline_mode = #tpu.pipeline_mode<synchronous>, transform_indices = @transform_3, window_bounds = array<i64: 32, 32>}, {pipeline_mode = #tpu.pipeline_mode<synchronous>, transform_indices = @transform_4, window_bounds = array<i64: 1, 32>}, {pipeline_mode = #tpu.pipeline_mode<synchronous>, transform_indices = @transform_5, window_bounds = array<i64: 32, 8>}, {pipeline_mode = #tpu.pipeline_mode<synchronous>, transform_indices = @transform_6, window_bounds = array<i64: 1, 8>}, {transform_indices = @transform_7, window_bounds = array<i64: 4, 8>}]} {
    %c0_i32 = arith.constant 0 : i32
    %0 = arith.cmpi eq, %arg1, %c0_i32 : i32
    %1 = arith.extui %0 : i1 to i32
    %c0_i32_0 = arith.constant 0 : i32
    %2 = arith.cmpi ne, %1, %c0_i32_0 : i32
    scf.if %2 {
      %cst_11 = arith.constant 0.000000e+00 : f32
      %23 = vector.broadcast %cst_11 : f32 to vector<8x32xf32>
      %c0_12 = arith.constant 0 : index
      %c0_13 = arith.constant 0 : index
      %24 = vector.load %arg10[%c0_12, %c0_13] : memref<8x32xf32, #tpu.memory_space<vmem>>, vector<8x32xf32>
      tpu.vector_store %arg10[%c0_12, %c0_13], %23 {strides = array<i32>} : memref<8x32xf32, #tpu.memory_space<vmem>>, vector<8x32xf32>,
    } else {
    }
    %3 = tpu.iota {dimensions = array<i32: 0>} : vector<4x8x1xi32>
    %c4_i32 = arith.constant 4 : i32
    %4 = arith.muli %arg1, %c4_i32 : i32
    %5 = vector.broadcast %4 : i32 to vector<4x8x1xi32>
    %6 = arith.addi %3, %5 : vector<4x8x1xi32>
    %c0 = arith.constant 0 : index
    %c0_1 = arith.constant 0 : index
    %7 = vector.load %arg3[%c0, %c0_1] : memref<8x1xi32, #tpu.memory_space<vmem>>, vector<8x1xi32>
    %8 = vector.shape_cast %7 : vector<8x1xi32> to vector<1x8x1xi32>
    %9 = vector.broadcast %8 : vector<1x8x1xi32> to vector<4x8x1xi32>
    %10 = arith.cmpi slt, %6, %9 : vector<4x8x1xi32>
    %11 = arith.extui %10 : vector<4x8x1xi1> to vector<4x8x1xi32>
    %12 = arith.sitofp %11 : vector<4x8x1xi32> to vector<4x8x1xf32>
    %c0_2 = arith.constant 0 : index
    %c0_3 = arith.constant 0 : index
    %c0_4 = arith.constant 0 : index
    %13 = vector.load %arg2[%c0_2, %c0_3, %c0_4] : memref<4x8x32xf32, #tpu.memory_space<vmem>>, vector<4x8x32xf32>
    %c0_5 = arith.constant 0 : index
    %c0_6 = arith.constant 0 : index
    %14 = vector.load %arg10[%c0_5, %c0_6] : memref<8x32xf32, #tpu.memory_space<vmem>>, vector<8x32xf32>
    %15 = vector.broadcast %12 : vector<4x8x1xf32> to vector<4x8x32xf32>
    %16 = arith.mulf %13, %15 : vector<4x8x32xf32>
    %cst = arith.constant dense<0.000000e+00> : vector<8x32xf32>
    %17 = vector.multi_reduction <add>, %16, %cst [0] : vector<4x8x32xf32> to vector<8x32xf32>
    %18 = arith.addf %14, %17 : vector<8x32xf32>
    %c0_7 = arith.constant 0 : index
    %c0_8 = arith.constant 0 : index
    %19 = vector.load %arg10[%c0_7, %c0_8] : memref<8x32xf32, #tpu.memory_space<vmem>>, vector<8x32xf32>
    tpu.vector_store %arg10[%c0_7, %c0_8], %18 {strides = array<i32>} : memref<8x32xf32, #tpu.memory_space<vmem>>, vector<8x32xf32>,
    %c0_i32_9 = arith.constant 0 : i32
    %20 = arith.cmpi eq, %arg1, %c0_i32_9 : i32
    %21 = arith.extui %20 : i1 to i32
    %c0_i32_10 = arith.constant 0 : i32
    %22 = arith.cmpi ne, %21, %c0_i32_10 : i32
    scf.if %22 {
      %c0_11 = arith.constant 0 : index
      %c0_12 = arith.constant 0 : index
      %23 = vector.load %arg10[%c0_11, %c0_12] : memref<8x32xf32, #tpu.memory_space<vmem>>, vector<8x32xf32>
      %24 = vector.extract_strided_slice %23 {offsets = [0, 0], sizes = [4, 32], strides = [1, 1]} : vector<8x32xf32> to vector<4x32xf32>
      %25 = vector.extract_strided_slice %23 {offsets = [4, 0], sizes = [4, 32], strides = [1, 1]} : vector<8x32xf32> to vector<4x32xf32>
      %26 = arith.addf %24, %25 : vector<4x32xf32>
      %c0_13 = arith.constant 0 : index
      %c0_14 = arith.constant 0 : index
      %27 = vector.load %arg4[%c0_13, %c0_14] : memref<4x1xf32, #tpu.memory_space<vmem>>, vector<4x1xf32>
      %28 = vector.broadcast %27 : vector<4x1xf32> to vector<4x32xf32>
      %29 = arith.divf %26, %28 : vector<4x32xf32>
      %c0_15 = arith.constant 0 : index
      %c0_16 = arith.constant 0 : index
      %30 = vector.load %arg5[%c0_15, %c0_16] : memref<32x32xf32, #tpu.memory_space<vmem>>, vector<32x32xf32>
      %cst_17 = arith.constant dense<0.000000e+00> : vector<4x32xf32>
      %31 = tpu.matmul %29, %30, %cst_17 {dimension_numbers = #tpu.dot_dimension_numbers<[1], [0], [0], [1], [0, 0, 1, 1], [], []>} : vector<4x32xf32>, vector<32x32xf32>, vector<4x32xf32> -> vector<4x32xf32>
      %c0_18 = arith.constant 0 : index
      %c0_19 = arith.constant 0 : index
      %32 = vector.load %arg6[%c0_18, %c0_19] : memref<1x32xf32, #tpu.memory_space<vmem>>, vector<1x32xf32>
      %33 = vector.broadcast %32 : vector<1x32xf32> to vector<4x32xf32>
      %34 = arith.addf %31, %33 : vector<4x32xf32>
      %35 = math.tanh %34 : vector<4x32xf32>
      %c0_20 = arith.constant 0 : index
      %c0_21 = arith.constant 0 : index
      %36 = vector.load %arg7[%c0_20, %c0_21] : memref<32x8xf32, #tpu.memory_space<vmem>>, vector<32x8xf32>
      %cst_22 = arith.constant dense<0.000000e+00> : vector<4x8xf32>
      %37 = tpu.matmul %35, %36, %cst_22 {dimension_numbers = #tpu.dot_dimension_numbers<[1], [0], [0], [1], [0, 0, 1, 1], [], []>} : vector<4x32xf32>, vector<32x8xf32>, vector<4x8xf32> -> vector<4x8xf32>
      %c0_23 = arith.constant 0 : index
      %c0_24 = arith.constant 0 : index
      %38 = vector.load %arg8[%c0_23, %c0_24] : memref<1x8xf32, #tpu.memory_space<vmem>>, vector<1x8xf32>
      %39 = vector.broadcast %38 : vector<1x8xf32> to vector<4x8xf32>
      %40 = arith.addf %37, %39 : vector<4x8xf32>
      %c0_25 = arith.constant 0 : index
      %c0_26 = arith.constant 0 : index
      %41 = vector.load %arg9[%c0_25, %c0_26] : memref<4x8xf32, #tpu.memory_space<vmem>>, vector<4x8xf32>
      tpu.vector_store %arg9[%c0_25, %c0_26], %40 {strides = array<i32>} : memref<4x8xf32, #tpu.memory_space<vmem>>, vector<4x8xf32>,
    } else {
    }
    return
  }
  func.func @transform_0(%arg0: i32, %arg1: i32) -> (i32, i32, i32) {
    %c0_i32 = arith.constant 0 : i32
    %c0_i32_0 = arith.constant 0 : i32
    return %arg1, %arg0, %c0_i32 : i32, i32, i32
  }
  func.func @transform_1(%arg0: i32, %arg1: i32) -> (i32, i32) {
    %c0_i32 = arith.constant 0 : i32
    %c0_i32_0 = arith.constant 0 : i32
    return %arg0, %c0_i32 : i32, i32
  }
  func.func @transform_2(%arg0: i32, %arg1: i32) -> (i32, i32) {
    %c0_i32 = arith.constant 0 : i32
    %c0_i32_0 = arith.constant 0 : i32
    return %arg0, %c0_i32 : i32, i32
  }
  func.func @transform_3(%arg0: i32, %arg1: i32) -> (i32, i32) {
    %c0_i32 = arith.constant 0 : i32
    %c0_i32_0 = arith.constant 0 : i32
    %c0_i32_1 = arith.constant 0 : i32
    return %c0_i32, %c0_i32_0 : i32, i32
  }
  func.func @transform_4(%arg0: i32, %arg1: i32) -> (i32, i32) {
    %c0_i32 = arith.constant 0 : i32
    %c0_i32_0 = arith.constant 0 : i32
    %c0_i32_1 = arith.constant 0 : i32
    return %c0_i32, %c0_i32_0 : i32, i32
  }
  func.func @transform_5(%arg0: i32, %arg1: i32) -> (i32, i32) {
    %c0_i32 = arith.constant 0 : i32
    %c0_i32_0 = arith.constant 0 : i32
    %c0_i32_1 = arith.constant 0 : i32
    return %c0_i32, %c0_i32_0 : i32, i32
  }
  func.func @transform_6(%arg0: i32, %arg1: i32) -> (i32, i32) {
    %c0_i32 = arith.constant 0 : i32
    %c0_i32_0 = arith.constant 0 : i32
    %c0_i32_1 = arith.constant 0 : i32
    return %c0_i32, %c0_i32_0 : i32, i32
  }
  func.func @transform_7(%arg0: i32, %arg1: i32) -> (i32, i32) {
    %c0_i32 = arith.constant 0 : i32
    %c0_i32_0 = arith.constant 0 : i32
    return %arg0, %c0_i32 : i32, i32
  }
}

</mosaic_0001>

<llo_original>
// kernel: tpu_custom_call.1
$region0: #{tpu_custom_call.1}
  #allocation0 [shape = 'u32[]', space=smem, size = 0x4, offset = 0x4, fixed_abs, tag = 'smem constant byte address 0x4 - core index']
  #allocation1 [shape = 'u32[72,128]{1,0:T(1,128)}', space=vmem, size = 0x9000, scoped, tag = 'internal scratch']
  #allocation2 [shape = 'f32[8,32]{1,0:T(8,128)}', space=vmem, size = 0x1000, scoped, tag = 'scratch operand']
  %s0 = inlined_call_operand.vmem [shape: f32[4,8,32], index: 0, kind: input, shape index: {}]
  %s1 = inlined_call_operand.vmem [shape: s32[8,1], index: 1, kind: input, shape index: {}]
  %s2 = inlined_call_operand.vmem [shape: f32[4,1], index: 2, kind: input, shape index: {}]
  %s3 = inlined_call_operand.hbm [shape: f32[32,32], index: 3, kind: input, shape index: {}]
  %s4 = inlined_call_operand.vmem [shape: f32[1,32], index: 4, kind: input, shape index: {}]
  %s5 = inlined_call_operand.vmem [shape: f32[32,8], index: 5, kind: input, shape index: {}]
  %s6 = inlined_call_operand.vmem [shape: f32[1,8], index: 6, kind: input, shape index: {}]
  %s7 = inlined_call_operand.hbm [shape: f32[4,8], index: 7, kind: output, shape index: {}]
  %s8 = sld [smem:[#allocation0]]
  $region50: #{tpu_custom_call.1} parent=0
    _
  %s10 = ssub.s32 1, %s8
  %s11 = scalar_select 0, %s10, %s8
  $region1: #{tpu_custom_call.1} parent=0
    #allocation3 [shape = 'u8[16384]{0}', space=vmem, size = 0x4000, scoped, tag = 'input window, operand 3, single buffered']
    #allocation4 [shape = 's32[1]{0}', space=sflag, size = 0x4, scoped, tag = 'scoped memory for tpu_custom_call.1']
    #allocation5 [shape = 's32[1]{0}', space=sflag, size = 0x4, scoped, tag = 'scoped memory for tpu_custom_call.1']
    #allocation6 [shape = 'u8[2048]{0}', space=vmem, size = 0x800, scoped, tag = 'output window, operand 0, single buffered']
    %12 = vsyncpa [#allocation4], 0
    %13 = vsyncpa [#allocation5], 0
    // Predicated region
    $region2: #{tpu_custom_call.1} parent=1 // pred_check
      _
    $region3: #{tpu_custom_call.1} parent=1 // pred_check_branch
      %15 = sbr.rel (0) target = $region5
    $region4: #{tpu_custom_call.1} parent=1 // pred_region
      _
    $region5: #{tpu_custom_call.1} parent=1 // pred_fallthru
      _
    // Predicated region
    $region6: #{tpu_custom_call.1} parent=1 // pred_check
      _
    $region7: #{tpu_custom_call.1} parent=1 // pred_check_branch
      %17 = sbr.rel (0) target = $region9
    $region8: #{tpu_custom_call.1} parent=1 // pred_region
      _
    $region9: #{tpu_custom_call.1} parent=1 // pred_fallthru
      _
    // Predicated region
    $region10: #{tpu_custom_call.1} parent=1 // pred_check
      _
    $region11: #{tpu_custom_call.1} parent=1 // pred_check_branch
      %19 = sbr.rel (0) target = $region13
    $region12: #{tpu_custom_call.1} parent=1 // pred_region
      _
    $region13: #{tpu_custom_call.1} parent=1 // pred_fallthru
      _
    // Predicated region
    $region14: #{tpu_custom_call.1} parent=1 // pred_check
      _
    $region15: #{tpu_custom_call.1} parent=1 // pred_check_branch
      %21 = sbr.rel (0) target = $region17
    $region16: #{tpu_custom_call.1} parent=1 // pred_region
      %23 = vsyncadd [#allocation4], 0
      %s24 = sshll.u32 %s3, 4
      %s25 = int_to_ptr.hbm [resolvable:$true] %s24
      %s26 = sshll.u32 [#allocation3], 4
      %s27 = int_to_ptr.vmem [resolvable:$true] %s26
      %32 = dma.hbm_to_vmem [thread:$0]  %s25, 512, %s27, [#allocation4], 128, 128, 8
    $region17: #{tpu_custom_call.1} parent=1 // pred_fallthru
      _
    // Predicated region
    $region18: #{tpu_custom_call.1} parent=1 // pred_check
      _
    $region19: #{tpu_custom_call.1} parent=1 // pred_check_branch
      %34 = sbr.rel (0) target = $region21
    $region20: #{tpu_custom_call.1} parent=1 // pred_region
      _
    $region21: #{tpu_custom_call.1} parent=1 // pred_fallthru
      _
    // Predicated region
    $region22: #{tpu_custom_call.1} parent=1 // pred_check
      _
    $region23: #{tpu_custom_call.1} parent=1 // pred_check_branch
      %36 = sbr.rel (0) target = $region25
    $region24: #{tpu_custom_call.1} parent=1 // pred_region
      _
    $region25: #{tpu_custom_call.1} parent=1 // pred_fallthru
      _
    // Predicated region
    $region26: #{tpu_custom_call.1} parent=1 // pred_check
      _
    $region27: #{tpu_custom_call.1} parent=1 // pred_check_branch
      %38 = sbr.rel (0) target = $region29
    $region28: #{tpu_custom_call.1} parent=1 // pred_region
      _
    $region29: #{tpu_custom_call.1} parent=1 // pred_fallthru
      _
    // Predicated region
    $region30: #{tpu_custom_call.1} parent=1 // pred_check
      _
    $region31: #{tpu_custom_call.1} parent=1 // pred_check_branch
      %40 = sbr.rel (0) target = $region33
    $region32: #{tpu_custom_call.1} parent=1 // pred_region
      %42 = dma.done [#allocation4], 512
    $region33: #{tpu_custom_call.1} parent=1 // pred_fallthru
      _
    %p43 = scmp.eq.s32.totalorder 0, 0
    // Predicated region
    $region34: #{tpu_custom_call.1} parent=1 // pred_check
      %p44 = pneg %p43
    $region35: #{tpu_custom_call.1} parent=1 // pred_check_branch
      %46 = sbr.rel (%p44) target = $region37
    $region36: #{tpu_custom_call.1} parent=1 // pred_region
      %vm47 = vcmask 261120
      %48 = vst.msk [vmem:[#allocation2] sm:$0xff] %vm47, 0.0
    $region37: #{tpu_custom_call.1} parent=1 // pred_fallthru
      _
    %s49 = smul.u32 0, 4
    %v50 = vstv %s49
    %v51 = vadd.s32 %v50, 1
    %v52 = vadd.s32 %v50, 2
    %v53 = vadd.s32 %v50, 3
    %v54 = vld [vmem:[%s1] sm:$0xff]
    %vm55 = vcmp.lt.s32.totalorder %v50, %v54
    %vm56 = vcmp.lt.s32.totalorder %v51, %v54
    %vm57 = vcmp.lt.s32.totalorder %v52, %v54
    %vm58 = vcmp.lt.s32.totalorder %v53, %v54
    %v59 = vsel %vm55, 1, 0
    %v60 = vsel %vm56, 1, 0
    %v61 = vsel %vm57, 1, 0
    %v62 = vsel %vm58, 1, 0
    %v63 = vcvt.s32.f32 %v59
    %v64 = vcvt.s32.f32 %v60
    %v65 = vcvt.s32.f32 %v61
    %v66 = vcvt.s32.f32 %v62
    %v67 = vld [vmem:[%s0] sm:$0xff]
    %v68 = vld [vmem:[%s0 + $0x8] sm:$0xff]
    %v69 = vld [vmem:[%s0 + $0x10] sm:$0xff]
    %v70 = vld [vmem:[%s0 + $0x18] sm:$0xff]
    %v71 = vld [vmem:[#allocation2] sm:$0xff]
    %73 = vset.pattern.permute.xlu0 0
    %74 = vperm.xlu0 %73, %v63
    %v75 = vpop.permute.xlu0 %74
    %78 = vset.pattern.permute.xlu0 0
    %79 = vperm.xlu0 %78, %v64
    %v80 = vpop.permute.xlu0 %79
    %83 = vset.pattern.permute.xlu0 0
    %84 = vperm.xlu0 %83, %v65
    %v85 = vpop.permute.xlu0 %84
    %88 = vset.pattern.permute.xlu0 0
    %89 = vperm.xlu0 %88, %v66
    %v90 = vpop.permute.xlu0 %89
    %v92 = vmul.f32 %v67, %v75
    %v93 = vmul.f32 %v68, %v80
    %v94 = vmul.f32 %v69, %v85
    %v95 = vmul.f32 %v70, %v90
    %vm96 = vcmask 261120
    %v97 = vsel %vm96, %v92, 0.0
    %v98 = vsel %vm96, %v93, 0.0
    %v99 = vadd.f32 %v97, %v98
    %v100 = vsel %vm96, %v94, 0.0
    %v101 = vadd.f32 %v99, %v100
    %v102 = vsel %vm96, %v95, 0.0
    %v103 = vadd.f32 %v101, %v102
    %v104 = vadd.f32 %v71, %v103
    %105 = vst.msk [vmem:[#allocation2] sm:$0xff] %vm96, %v104
    // Predicated region
    $region38: #{tpu_custom_call.1} parent=1 // pred_check
      %p106 = pneg %p43
    $region39: #{tpu_custom_call.1} parent=1 // pred_check_branch
      %108 = sbr.rel (%p106) target = $region41
    $region40: #{tpu_custom_call.1} parent=1 // pred_region
      %v109 = vld [vmem:[#allocation2] sm:$0xff]
      %v111 = vrot.slane %v109, 4
      %v113 = vadd.f32 %v109, %v111
      %v114 = vld [vmem:[%s2] sm:$0xf]
      %116 = vset.pattern.permute.xlu0 0
      %117 = vperm.xlu0 %116, %v114
      %v118 = vpop.permute.xlu0 %117
      %v120 = vrcp.pop %v118
      %v121 = vmul.f32 %v118, %v120
      %v122 = vsub.f32 1.0, %v121
      %v123 = vmul.f32 %v120, %v122
      %v124 = vadd.f32 %v120, %v123
      %vm125 = vweird.f32 %v118
      %vm126 = vweird.f32 %v120
      %vm127 = vmor %vm125, %vm126
      %v128 = vsel %vm127, %v120, %v124
      %v129 = vand.u32 2147483647, %v118
      %vm130 = vcmp.eq.f32.partialorder %v129, 8.507059e+37
      %v131 = vand.u32 %v118, 2147483648
      %v132 = vor.u32 1.1754944e-38, %v131
      %v133 = vsel %vm130, %v132, %v128
      %v134 = vmul.f32 %v113, %v133
      %v135 = vld [vmem:[#allocation3] sm:$0xff]
      %v136 = vld [vmem:[#allocation3 + $0x8] sm:$0xff]
      %v137 = vld [vmem:[#allocation3 + $0x10] sm:$0xff]
      %v138 = vld [vmem:[#allocation3 + $0x18] sm:$0xff]
      %v139 = vld [vmem:[%s4] sm:$0x1]
      %v141 = vperm.slane %v139, 0
      %v144 = vsel %vm96, %v134, 0
      %146 = vmatpush.msra.mxu0 0.0
      %147 = vmatpush.msra.mxu0 0.0
      %148 = vmatpush.msra.mxu0 0.0
      %149 = vmatpush.msra.mxu0 0.0
      %150 = vmatpush.msra.mxu0 0.0
      %151 = vmatpush.msra.mxu0 0.0
      %152 = vmatpush.msra.mxu0 0.0
      %153 = vmatpush.msra.mxu0 0.0
      %154 = vmatpush.msra.mxu0 0.0
      %155 = vmatpush.msra.mxu0 0.0
      %156 = vmatpush.msra.mxu0 0.0
      %157 = vmatpush.msra.mxu0 0.0
      %158 = vmatpush.msra.mxu0 %v138
      %159 = vmatpush.msra.mxu0 %v137
      %160 = vmatpush.msra.mxu0 %v136
      %161 = vmatpush.msra.mxu0 %v135
      %162 = vmatmul.f32.gmra.mxu0 %v144
      %v163 = vpop.f32.mrf.mxu0
      %v164 = vadd.f32 %v141, %v163
      %165 = vdwg.mxu0
      %v166 = vtanh.pop %v164
      %v167 = vld [vmem:[%s5] sm:$0xff]
      %v168 = vld [vmem:[%s5 + $0x8] sm:$0xff]
      %v169 = vld [vmem:[%s5 + $0x10] sm:$0xff]
      %v170 = vld [vmem:[%s5 + $0x18] sm:$0xff]
      %v171 = vld [vmem:[%s6] sm:$0x1]
      %v173 = vperm.slane %v171, 0
      %v176 = vsel %vm96, %v166, 0
      %178 = vmatpush.msra.mxu0 0.0
      %179 = vmatpush.msra.mxu0 0.0
      %180 = vmatpush.msra.mxu0 0.0
      %181 = vmatpush.msra.mxu0 0.0
      %182 = vmatpush.msra.mxu0 0.0
      %183 = vmatpush.msra.mxu0 0.0
      %184 = vmatpush.msra.mxu0 0.0
      %185 = vmatpush.msra.mxu0 0.0
      %186 = vmatpush.msra.mxu0 0.0
      %187 = vmatpush.msra.mxu0 0.0
      %188 = vmatpush.msra.mxu0 0.0
      %189 = vmatpush.msra.mxu0 0.0
      %190 = vmatpush.msra.mxu0 %v170
      %191 = vmatpush.msra.mxu0 %v169
      %192 = vmatpush.msra.mxu0 %v168
      %193 = vmatpush.msra.mxu0 %v167
      %194 = vmatmul.f32.gmra.mxu0 %v176
      %v195 = vpop.f32.mrf.mxu0
      %v196 = vadd.f32 %v173, %v195
      %197 = vdwg.mxu0
      %vm198 = vcmask 60416
      %199 = vst.msk [vmem:[#allocation6] sm:$0xf] %vm198, %v196
    $region41: #{tpu_custom_call.1} parent=1 // pred_fallthru
      _
    // Predicated region
    $region42: #{tpu_custom_call.1} parent=1 // pred_check
      _
    $region43: #{tpu_custom_call.1} parent=1 // pred_check_branch
      %201 = sbr.rel (0) target = $region45
    $region44: #{tpu_custom_call.1} parent=1 // pred_region
      %203 = vsyncadd [#allocation5], 0
      %s205 = sshll.u32 [#allocation6], 4
      %s206 = int_to_ptr.vmem [resolvable:$true] %s205
      %s207 = sshll.u32 %s7, 4
      %s208 = int_to_ptr.hbm [resolvable:$true] %s207
      %210 = dma.vmem_to_hbm [thread:$0]  %s206, 64, %s208, [#allocation5]
    $region45: #{tpu_custom_call.1} parent=1 // pred_fallthru
      _
    // Predicated region
    $region46: #{tpu_custom_call.1} parent=1 // pred_check
      _
    $region47: #{tpu_custom_call.1} parent=1 // pred_check_branch
      %212 = sbr.rel (0) target = $region49
    $region48: #{tpu_custom_call.1} parent=1 // pred_region
      %214 = dma.done [#allocation5], 64
    $region49: #{tpu_custom_call.1} parent=1 // pred_fallthru
      _
    %215 = vsyncpa [#allocation4], 1
    %216 = vsyncpa [#allocation5], 1

// kernel: tpu_custom_call.1
$region0: #{tpu_custom_call.1}
  #allocation0 [shape = 'u32[]', space=smem, size = 0x4, offset = 0x4, fixed_abs, tag = 'smem constant byte address 0x4 - core index']
  #allocation1 [shape = 'u32[72,128]{1,0:T(1,128)}', space=vmem, size = 0x9000, scoped, tag = 'internal scratch']
  #allocation2 [shape = 'f32[8,32]{1,0:T(8,128)}', space=vmem, size = 0x1000, scoped, tag = 'scratch operand']
  %s0 = inlined_call_operand.vmem [shape: f32[4,8,32], index: 0, kind: input, shape index: {}]
  %s1 = inlined_call_operand.vmem [shape: s32[8,1], index: 1, kind: input, shape index: {}]
  %s2 = inlined_call_operand.vmem [shape: f32[4,1], index: 2, kind: input, shape index: {}]
  %s3 = inlined_call_operand.hbm [shape: f32[32,32], index: 3, kind: input, shape index: {}]
  %s4 = inlined_call_operand.vmem [shape: f32[1,32], index: 4, kind: input, shape index: {}]
  %s5 = inlined_call_operand.vmem [shape: f32[32,8], index: 5, kind: input, shape index: {}]
  %s6 = inlined_call_operand.vmem [shape: f32[1,8], index: 6, kind: input, shape index: {}]
  %s7 = inlined_call_operand.hbm [shape: f32[4,8], index: 7, kind: output, shape index: {}]
  %s8 = sld [smem:[#allocation0]]
  $region50: #{tpu_custom_call.1} parent=0
    _
  %s10 = ssub.s32 1, %s8
  %s11 = scalar_select 0, %s10, %s8
  $region1: #{tpu_custom_call.1} parent=0
    #allocation3 [shape = 'u8[16384]{0}', space=vmem, size = 0x4000, scoped, tag = 'input window, operand 3, single buffered']
    #allocation4 [shape = 's32[1]{0}', space=sflag, size = 0x4, scoped, tag = 'scoped memory for tpu_custom_call.1']
    #allocation5 [shape = 's32[1]{0}', space=sflag, size = 0x4, scoped, tag = 'scoped memory for tpu_custom_call.1']
    #allocation6 [shape = 'u8[2048]{0}', space=vmem, size = 0x800, scoped, tag = 'output window, operand 0, single buffered']
    %12 = vsyncpa [#allocation4], 0
    %13 = vsyncpa [#allocation5], 0
    // Predicated region
    $region2: #{tpu_custom_call.1} parent=1 // pred_check
      _
    $region3: #{tpu_custom_call.1} parent=1 // pred_check_branch
      %15 = sbr.rel (0) target = $region5
    $region4: #{tpu_custom_call.1} parent=1 // pred_region
      _
    $region5: #{tpu_custom_call.1} parent=1 // pred_fallthru
      _
    // Predicated region
    $region6: #{tpu_custom_call.1} parent=1 // pred_check
      _
    $region7: #{tpu_custom_call.1} parent=1 // pred_check_branch
      %17 = sbr.rel (0) target = $region9
    $region8: #{tpu_custom_call.1} parent=1 // pred_region
      _
    $region9: #{tpu_custom_call.1} parent=1 // pred_fallthru
      _
    // Predicated region
    $region10: #{tpu_custom_call.1} parent=1 // pred_check
      _
    $region11: #{tpu_custom_call.1} parent=1 // pred_check_branch
      %19 = sbr.rel (0) target = $region13
    $region12: #{tpu_custom_call.1} parent=1 // pred_region
      _
    $region13: #{tpu_custom_call.1} parent=1 // pred_fallthru
      _
    // Predicated region
    $region14: #{tpu_custom_call.1} parent=1 // pred_check
      _
    $region15: #{tpu_custom_call.1} parent=1 // pred_check_branch
      %21 = sbr.rel (0) target = $region17
    $region16: #{tpu_custom_call.1} parent=1 // pred_region
      %23 = vsyncadd [#allocation4], 0
      %s24 = sshll.u32 %s3, 4
      %s25 = int_to_ptr.hbm [resolvable:$true] %s24
      %s26 = sshll.u32 [#allocation3], 4
      %s27 = int_to_ptr.vmem [resolvable:$true] %s26
      %32 = dma.hbm_to_vmem [thread:$0]  %s25, 512, %s27, [#allocation4], 128, 128, 8
    $region17: #{tpu_custom_call.1} parent=1 // pred_fallthru
      _
    // Predicated region
    $region18: #{tpu_custom_call.1} parent=1 // pred_check
      _
    $region19: #{tpu_custom_call.1} parent=1 // pred_check_branch
      %34 = sbr.rel (0) target = $region21
    $region20: #{tpu_custom_call.1} parent=1 // pred_region
      _
    $region21: #{tpu_custom_call.1} parent=1 // pred_fallthru
      _
    // Predicated region
    $region22: #{tpu_custom_call.1} parent=1 // pred_check
      _
    $region23: #{tpu_custom_call.1} parent=1 // pred_check_branch
      %36 = sbr.rel (0) target = $region25
    $region24: #{tpu_custom_call.1} parent=1 // pred_region
      _
    $region25: #{tpu_custom_call.1} parent=1 // pred_fallthru
      _
    // Predicated region
    $region26: #{tpu_custom_call.1} parent=1 // pred_check
      _
    $region27: #{tpu_custom_call.1} parent=1 // pred_check_branch
      %38 = sbr.rel (0) target = $region29
    $region28: #{tpu_custom_call.1} parent=1 // pred_region
      _
    $region29: #{tpu_custom_call.1} parent=1 // pred_fallthru
      _
    // Predicated region
    $region30: #{tpu_custom_call.1} parent=1 // pred_check
      _
    $region31: #{tpu_custom_call.1} parent=1 // pred_check_branch
      %40 = sbr.rel (0) target = $region33
    $region32: #{tpu_custom_call.1} parent=1 // pred_region
      %42 = dma.done [#allocation4], 512
    $region33: #{tpu_custom_call.1} parent=1 // pred_fallthru
      _
    %p43 = scmp.eq.s32.totalorder 0, 0
    // Predicated region
    $region34: #{tpu_custom_call.1} parent=1 // pred_check
      %p44 = pneg %p43
    $region35: #{tpu_custom_call.1} parent=1 // pred_check_branch
      %46 = sbr.rel (%p44) target = $region37
    $region36: #{tpu_custom_call.1} parent=1 // pred_region
      %vm47 = vcmask 261120
      %48 = vst.msk [vmem:[#allocation2] sm:$0xff] %vm47, 0.0
    $region37: #{tpu_custom_call.1} parent=1 // pred_fallthru
      _
    %s49 = smul.u32 0, 4
    %v50 = vstv %s49
    %v51 = vadd.s32 %v50, 1
    %v52 = vadd.s32 %v50, 2
    %v53 = vadd.s32 %v50, 3
    %v54 = vld [vmem:[%s1] sm:$0xff]
    %vm55 = vcmp.lt.s32.totalorder %v50, %v54
    %vm56 = vcmp.lt.s32.totalorder %v51, %v54
    %vm57 = vcmp.lt.s32.totalorder %v52, %v54
    %vm58 = vcmp.lt.s32.totalorder %v53, %v54
    %v59 = vsel %vm55, 1, 0
    %v60 = vsel %vm56, 1, 0
    %v61 = vsel %vm57, 1, 0
    %v62 = vsel %vm58, 1, 0
    %v63 = vcvt.s32.f32 %v59
    %v64 = vcvt.s32.f32 %v60
    %v65 = vcvt.s32.f32 %v61
    %v66 = vcvt.s32.f32 %v62
    %v67 = vld [vmem:[%s0] sm:$0xff]
    %v68 = vld [vmem:[%s0 + $0x8] sm:$0xff]
    %v69 = vld [vmem:[%s0 + $0x10] sm:$0xff]
    %v70 = vld [vmem:[%s0 + $0x18] sm:$0xff]
    %v71 = vld [vmem:[#allocation2] sm:$0xff]
    %73 = vset.pattern.permute.xlu0 0
    %74 = vperm.xlu0 %73, %v63
    %v75 = vpop.permute.xlu0 %74
    %78 = vset.pattern.permute.xlu0 0
    %79 = vperm.xlu0 %78, %v64
    %v80 = vpop.permute.xlu0 %79
    %83 = vset.pattern.permute.xlu0 0
    %84 = vperm.xlu0 %83, %v65
    %v85 = vpop.permute.xlu0 %84
    %88 = vset.pattern.permute.xlu0 0
    %89 = vperm.xlu0 %88, %v66
    %v90 = vpop.permute.xlu0 %89
    %v92 = vmul.f32 %v67, %v75
    %v93 = vmul.f32 %v68, %v80
    %v94 = vmul.f32 %v69, %v85
    %v95 = vmul.f32 %v70, %v90
    %vm96 = vcmask 261120
    %v97 = vsel %vm96, %v92, 0.0
    %v98 = vsel %vm96, %v93, 0.0
    %v99 = vadd.f32 %v97, %v98
    %v100 = vsel %vm96, %v94, 0.0
    %v101 = vadd.f32 %v99, %v100
    %v102 = vsel %vm96, %v95, 0.0
    %v103 = vadd.f32 %v101, %v102
    %v104 = vadd.f32 %v71, %v103
    %105 = vst.msk [vmem:[#allocation2] sm:$0xff] %vm96, %v104
    // Predicated region
    $region38: #{tpu_custom_call.1} parent=1 // pred_check
      %p106 = pneg %p43
    $region39: #{tpu_custom_call.1} parent=1 // pred_check_branch
      %108 = sbr.rel (%p106) target = $region41
    $region40: #{tpu_custom_call.1} parent=1 // pred_region
      %v109 = vld [vmem:[#allocation2] sm:$0xff]
      %v111 = vrot.slane %v109, 4
      %v113 = vadd.f32 %v109, %v111
      %v114 = vld [vmem:[%s2] sm:$0xf]
      %116 = vset.pattern.permute.xlu0 0
      %117 = vperm.xlu0 %116, %v114
      %v118 = vpop.permute.xlu0 %117
      %v120 = vrcp.pop %v118
      %v121 = vmul.f32 %v118, %v120
      %v122 = vsub.f32 1.0, %v121
      %v123 = vmul.f32 %v120, %v122
      %v124 = vadd.f32 %v120, %v123
      %vm125 = vweird.f32 %v118
      %vm126 = vweird.f32 %v120
      %vm127 = vmor %vm125, %vm126
      %v128 = vsel %vm127, %v120, %v124
      %v129 = vand.u32 2147483647, %v118
      %vm130 = vcmp.eq.f32.partialorder %v129, 8.507059e+37
      %v131 = vand.u32 %v118, 2147483648
      %v132 = vor.u32 1.1754944e-38, %v131
      %v133 = vsel %vm130, %v132, %v128
      %v134 = vmul.f32 %v113, %v133
      %v135 = vld [vmem:[#allocation3] sm:$0xff]
      %v136 = vld [vmem:[#allocation3 + $0x8] sm:$0xff]
      %v137 = vld [vmem:[#allocation3 + $0x10] sm:$0xff]
      %v138 = vld [vmem:[#allocation3 + $0x18] sm:$0xff]
      %v139 = vld [vmem:[%s4] sm:$0x1]
      %v141 = vperm.slane %v139, 0
      %v144 = vsel %vm96, %v134, 0
      %146 = vmatpush.msra.mxu0 0.0
      %147 = vmatpush.msra.mxu0 0.0
      %148 = vmatpush.msra.mxu0 0.0
      %149 = vmatpush.msra.mxu0 0.0
      %150 = vmatpush.msra.mxu0 0.0
      %151 = vmatpush.msra.mxu0 0.0
      %152 = vmatpush.msra.mxu0 0.0
      %153 = vmatpush.msra.mxu0 0.0
      %154 = vmatpush.msra.mxu0 0.0
      %155 = vmatpush.msra.mxu0 0.0
      %156 = vmatpush.msra.mxu0 0.0
      %157 = vmatpush.msra.mxu0 0.0
      %158 = vmatpush.msra.mxu0 %v138
      %159 = vmatpush.msra.mxu0 %v137
      %160 = vmatpush.msra.mxu0 %v136
      %161 = vmatpush.msra.mxu0 %v135
      %162 = vmatmul.f32.gmra.mxu0 %v144
      %v163 = vpop.f32.mrf.mxu0
      %v164 = vadd.f32 %v141, %v163
      %165 = vdwg.mxu0
      %v166 = vtanh.pop %v164
      %v167 = vld [vmem:[%s5] sm:$0xff]
      %v168 = vld [vmem:[%s5 + $0x8] sm:$0xff]
      %v169 = vld [vmem:[%s5 + $0x10] sm:$0xff]
      %v170 = vld [vmem:[%s5 + $0x18] sm:$0xff]
      %v171 = vld [vmem:[%s6] sm:$0x1]
      %v173 = vperm.slane %v171, 0
      %v176 = vsel %vm96, %v166, 0
      %178 = vmatpush.msra.mxu0 0.0
      %179 = vmatpush.msra.mxu0 0.0
      %180 = vmatpush.msra.mxu0 0.0
      %181 = vmatpush.msra.mxu0 0.0
      %182 = vmatpush.msra.mxu0 0.0
      %183 = vmatpush.msra.mxu0 0.0
      %184 = vmatpush.msra.mxu0 0.0
      %185 = vmatpush.msra.mxu0 0.0
      %186 = vmatpush.msra.mxu0 0.0
      %187 = vmatpush.msra.mxu0 0.0
      %188 = vmatpush.msra.mxu0 0.0
      %189 = vmatpush.msra.mxu0 0.0
      %190 = vmatpush.msra.mxu0 %v170
      %191 = vmatpush.msra.mxu0 %v169
      %192 = vmatpush.msra.mxu0 %v168
      %193 = vmatpush.msra.mxu0 %v167
      %194 = vmatmul.f32.gmra.mxu0 %v176
      %v195 = vpop.f32.mrf.mxu0
      %v196 = vadd.f32 %v173, %v195
      %197 = vdwg.mxu0
      %vm198 = vcmask 60416
      %199 = vst.msk [vmem:[#allocation6] sm:$0xf] %vm198, %v196
    $region41: #{tpu_custom_call.1} parent=1 // pred_fallthru
      _
    // Predicated region
    $region42: #{tpu_custom_call.1} parent=1 // pred_check
      _
    $region43: #{tpu_custom_call.1} parent=1 // pred_check_branch
      %201 = sbr.rel (0) target = $region45
    $region44: #{tpu_custom_call.1} parent=1 // pred_region
      %203 = vsyncadd [#allocation5], 0
      %s205 = sshll.u32 [#allocation6], 4
      %s206 = int_to_ptr.vmem [resolvable:$true] %s205
      %s207 = sshll.u32 %s7, 4
      %s208 = int_to_ptr.hbm [resolvable:$true] %s207
      %210 = dma.vmem_to_hbm [thread:$0]  %s206, 64, %s208, [#allocation5]
    $region45: #{tpu_custom_call.1} parent=1 // pred_fallthru
      _
    // Predicated region
    $region46: #{tpu_custom_call.1} parent=1 // pred_check
      _
    $region47: #{tpu_custom_call.1} parent=1 // pred_check_branch
      %212 = sbr.rel (0) target = $region49
    $region48: #{tpu_custom_call.1} parent=1 // pred_region
      %214 = dma.done [#allocation5], 64
    $region49: #{tpu_custom_call.1} parent=1 // pred_fallthru
      _
    %215 = vsyncpa [#allocation4], 1
    %216 = vsyncpa [#allocation5], 1

</llo_original>
